<compile_context>
chip_gen: v7x
topology: tpu7x:2x2x1
jax: 0.10.0
libtpu: 0.0.40
codegen_flags: <defaults>
</compile_context>

<pallas_src>
import functools

import jax
import jax.numpy as jnp
from jax.experimental import pallas as pl
from jax.experimental.pallas import tpu as pltpu


def _rmsnorm_kernel(x_ref, w_ref, o_ref, *, eps, inv_hidden, scale_in_input_dtype):
    # x_ref: (block_rows, hidden_p), w_ref: (1, hidden_p), o_ref: like x_ref.
    #
    # f32 accumulation for the sum of squares (precision + reference match).
    # This upcast value is only used BEFORE the reduce; the scaling re-reads
    # x_ref so no (block_rows, hidden) f32 value spans the reduce barrier.
    xf = x_ref[...].astype(jnp.float32)
    ssq = jnp.sum(xf * xf, axis=-1, keepdims=True)        # XLU lane reduce
    inv = jax.lax.rsqrt(ssq * inv_hidden + eps)           # EUP slot, (rows, 1)

    if scale_in_input_dtype:
        # Packed bf16/fp16 scaling path (v7x: keeps the VALU slot under the
        # 3.2 TB/s HBM roofline). Sum-of-squares above stayed in f32.
        x = x_ref[...]
        o_ref[...] = ((x * inv.astype(x.dtype)) * w_ref[...]).astype(o_ref.dtype)
    else:
        # f32 path (f32 inputs; also the right choice on v5e, whose VPU/EUP
        # have no native bf16).
        x = x_ref[...].astype(jnp.float32)
        o_ref[...] = ((x * inv) * w_ref[...]).astype(o_ref.dtype)


def _vmem_capacity_bytes():
    # v5e/v6e: 128 MiB per TensorCore, v7x: 64 MiB per TensorCore.
    try:
        return int(pltpu.get_tpu_info().vmem_capacity_bytes)
    except Exception:
        return 64 * 1024 * 1024  # conservative fallback (v7x-sized)


def _choose_block_rows(rows, hidden_p, itemsize, vmem_bytes):
    """Largest row tile that (a) reaches a multi-MiB DMA block and (b) fits
    VMEM including double-buffered in/out blocks and in-kernel f32 scratch."""
    # Sublane packing granularity: 8 rows for f32, 16 for bf16, 32 for int8.
    packing = max(8, 32 // max(itemsize, 1))
    row_bytes = max(hidden_p * itemsize, 1)

    # Resident per block: input x2 + output x2 (double-buffered pipeline)
    # plus ~1x f32 scratch for the upcast/squared intermediate.
    f32_scratch_ratio = 4.0 / itemsize
    per_block_factor = 4.0 + f32_scratch_ratio

    # Spend at most half of reported VMEM on pipeline buffers + scratch; this
    # stays safe even if the reported figure is per-chip on a 2-TC part.
    vmem_budget = 0.5 * vmem_bytes
    target_block_bytes = 8 << 20  # ~8 MiB of input per block (no row cap)
    block_bytes = min(float(target_block_bytes), vmem_budget / per_block_factor)

    br = int(block_bytes // row_bytes)
    br = min(br, rows)
    br = max(br, packing)
    if br < rows:
        br = max((br // packing) * packing, packing)
    return int(br)


def rmsnorm(x, weight, eps=1e-5, block_rows=None):
    """RMSNorm over the last axis. x: (..., hidden); weight: (hidden,)."""
    orig_shape = x.shape
    hidden = orig_shape[-1]
    x2d = x.reshape(-1, hidden)
    rows = x2d.shape[0]
    itemsize = x2d.dtype.itemsize

    # Lane-dense hidden: pad to a multiple of 128 outside the kernel. Padded
    # columns are zeros, so the sum of squares is unchanged; the mean uses the
    # true hidden size via inv_hidden.
    hidden_p = max(128, ((hidden + 127) // 128) * 128)
    scale_in_input_dtype = itemsize < 4          # bf16/fp16: packed scaling
    scale_dtype = x2d.dtype if scale_in_input_dtype else jnp.float32

    w1d = weight.astype(scale_dtype)             # pre-cast: no per-step astype
    if hidden_p != hidden:
        x2d = jnp.pad(x2d, ((0, 0), (0, hidden_p - hidden)))
        w1d = jnp.pad(w1d, (0, hidden_p - hidden))
    w2d = w1d.reshape(1, hidden_p)

    vmem_cap = _vmem_capacity_bytes()
    if block_rows is None:
        block_rows = _choose_block_rows(rows, hidden_p, itemsize, vmem_cap)
    else:
        block_rows = int(block_rows)
        packing = max(8, 32 // max(itemsize, 1))
        block_rows = min(block_rows, rows)
        if block_rows < rows:
            block_rows = max((block_rows // packing) * packing, packing)

    # Non-divisible row counts use a cdiv grid: the trailing partial block is
    # padded on read and its out-of-bounds stores are clamped; RMSNorm is
    # row-wise so padded rows cannot pollute valid rows.
    grid = (pl.cdiv(rows, block_rows),)

    # VMEM accounting: in+out blocks double-buffered + 1x f32 kernel scratch
    # + resident weight row + headroom.
    block_bytes = block_rows * hidden_p * itemsize
    f32_scratch = block_rows * hidden_p * 4
    vmem_limit = 4 * block_bytes + f32_scratch + 2 * hidden_p * 4 + (8 << 20)
    vmem_limit = max(32 << 20, min(vmem_limit, int(vmem_cap * 0.9)))

    out = pl.pallas_call(
        functools.partial(
            _rmsnorm_kernel,
            eps=float(eps),
            inv_hidden=1.0 / float(hidden),
            scale_in_input_dtype=scale_in_input_dtype,
        ),
        out_shape=jax.ShapeDtypeStruct((rows, hidden_p), x.dtype),
        grid_spec=pltpu.PrefetchScalarGridSpec(
            num_scalar_prefetch=0,
            grid=grid,
            in_specs=[
                pl.BlockSpec((block_rows, hidden_p), lambda i: (i, 0)),
                pl.BlockSpec((1, hidden_p), lambda i: (0, 0)),  # resident weight
            ],
            out_specs=pl.BlockSpec((block_rows, hidden_p), lambda i: (i, 0)),
        ),
        compiler_params=pltpu.CompilerParams(
            dimension_semantics=("parallel",),   # shard row grid across TCs
            vmem_limit_bytes=int(vmem_limit),
        ),
    )(x2d, w2d)

    if hidden_p != hidden:
        out = out[:, :hidden]
    return out.reshape(orig_shape)


def rmsnorm_ref(x, weight, eps=1e-5):
    xf = x.astype(jnp.float32)
    var = jnp.mean(xf * xf, axis=-1, keepdims=True)
    y = xf * jax.lax.rsqrt(var + eps)
    return (weight.astype(jnp.float32) * y).astype(x.dtype)


if __name__ == "__main__":
    # Shapes implied by the module's forward: (..., hidden), RMS over hidden.
    batch, seq, hidden = 2, 8, 32
    key = jax.random.PRNGKey(0)
    x = jax.random.normal(key, (batch, seq, hidden), dtype=jnp.float32)
    weight = jnp.ones((hidden,), dtype=jnp.float32)  # nn.Parameter(torch.ones)

    out = jax.block_until_ready(rmsnorm(x, weight, eps=1e-5))
    ref = rmsnorm_ref(x, weight, eps=1e-5)
    assert out.shape == x.shape and out.dtype == x.dtype
    assert jnp.allclose(out, ref, atol=1e-5, rtol=1e-5)

    # Tiled + masked-tail path: rows = 2*13 = 26 with block_rows = 8.
    x2 = jax.random.normal(jax.random.PRNGKey(1), (2, 13, 128), dtype=jnp.float32)
    w2 = 1.0 + 0.1 * jax.random.normal(jax.random.PRNGKey(2), (128,), dtype=jnp.float32)
    out2 = jax.block_until_ready(rmsnorm(x2, w2, eps=1e-5, block_rows=8))
    ref2 = rmsnorm_ref(x2, w2, eps=1e-5)
    assert out2.shape == x2.shape and out2.dtype == x2.dtype
    assert jnp.allclose(out2, ref2, atol=1e-5, rtol=1e-5)

    # bf16 packed-scaling path (v7x-friendly branch); f32 sum-of-squares kept.
    x3 = jax.random.normal(jax.random.PRNGKey(3), (4, 16, 256), dtype=jnp.bfloat16)
    w3 = jnp.ones((256,), dtype=jnp.float32)
    out3 = jax.block_until_ready(rmsnorm(x3, w3, eps=1e-5))
    ref3 = rmsnorm_ref(x3, w3, eps=1e-5)
    assert out3.shape == x3.shape and out3.dtype == x3.dtype
    assert jnp.allclose(out3.astype(jnp.float32), ref3.astype(jnp.float32),
                        atol=2e-2, rtol=2e-2)

    print("KERNEL_OK")
</pallas_src>

<mosaic_0001>
module attributes {stable_mosaic.version = 11 : i64} {
  func.func @_rmsnorm_kernel(%arg0: i32, %arg1: memref<16x128xf32, #tpu.memory_space<vmem>>, %arg2: memref<1x128xf32, #tpu.memory_space<vmem>>, %arg3: memref<16x128xf32, #tpu.memory_space<vmem>>) attributes {dimension_semantics = [#tpu.dimension_semantics<parallel>], iteration_bounds = array<i64: 1>, scalar_prefetch = 0 : i64, scratch_operands = 0 : i64, tpu.core_type = #tpu.core_type<tc>, window_params = [{transform_indices = @transform_0, window_bounds = array<i64: 16, 128>}, {pipeline_mode = #tpu.pipeline_mode<synchronous>, transform_indices = @transform_1, window_bounds = array<i64: 1, 128>}, {transform_indices = @transform_2, window_bounds = array<i64: 16, 128>}]} {
    %c0 = arith.constant 0 : index
    %c0_0 = arith.constant 0 : index
    %0 = vector.load %arg1[%c0, %c0_0] : memref<16x128xf32, #tpu.memory_space<vmem>>, vector<16x128xf32>
    %1 = arith.mulf %0, %0 : vector<16x128xf32>
    %cst = arith.constant dense<0.000000e+00> : vector<16xf32>
    %2 = vector.multi_reduction <add>, %1, %cst [1] : vector<16x128xf32> to vector<16xf32>
    %3 = vector.shape_cast %2 : vector<16xf32> to vector<16x1xf32>
    %cst_1 = arith.constant 3.125000e-02 : f32
    %4 = vector.broadcast %cst_1 : f32 to vector<16x1xf32>
    %5 = arith.mulf %3, %4 : vector<16x1xf32>
    %cst_2 = arith.constant 9.99999974E-6 : f32
    %6 = vector.broadcast %cst_2 : f32 to vector<16x1xf32>
    %7 = arith.addf %5, %6 : vector<16x1xf32>
    %8 = math.rsqrt %7 : vector<16x1xf32>
    %c0_3 = arith.constant 0 : index
    %c0_4 = arith.constant 0 : index
    %9 = vector.load %arg1[%c0_3, %c0_4] : memref<16x128xf32, #tpu.memory_space<vmem>>, vector<16x128xf32>
    %10 = vector.broadcast %8 : vector<16x1xf32> to vector<16x128xf32>
    %11 = arith.mulf %9, %10 : vector<16x128xf32>
    %c0_5 = arith.constant 0 : index
    %c0_6 = arith.constant 0 : index
    %12 = vector.load %arg2[%c0_5, %c0_6] : memref<1x128xf32, #tpu.memory_space<vmem>>, vector<1x128xf32>
    %13 = vector.broadcast %12 : vector<1x128xf32> to vector<16x128xf32>
    %14 = arith.mulf %11, %13 : vector<16x128xf32>
    %c0_7 = arith.constant 0 : index
    %c0_8 = arith.constant 0 : index
    %15 = vector.load %arg3[%c0_7, %c0_8] : memref<16x128xf32, #tpu.memory_space<vmem>>, vector<16x128xf32>
    tpu.vector_store %arg3[%c0_7, %c0_8], %14 {strides = array<i32>} : memref<16x128xf32, #tpu.memory_space<vmem>>, vector<16x128xf32>,
    return
  }
  func.func @transform_0(%arg0: i32) -> (i32, i32) {
    %c0_i32 = arith.constant 0 : i32
    %c0_i32_0 = arith.constant 0 : i32
    return %arg0, %c0_i32 : i32, i32
  }
  func.func @transform_1(%arg0: i32) -> (i32, i32) {
    %c0_i32 = arith.constant 0 : i32
    %c0_i32_0 = arith.constant 0 : i32
    %c0_i32_1 = arith.constant 0 : i32
    return %c0_i32, %c0_i32_0 : i32, i32
  }
  func.func @transform_2(%arg0: i32) -> (i32, i32) {
    %c0_i32 = arith.constant 0 : i32
    %c0_i32_0 = arith.constant 0 : i32
    return %arg0, %c0_i32 : i32, i32
  }
}

</mosaic_0001>

<llo_original>
// kernel: tpu_custom_call.1
$region0: #{tpu_custom_call.1}
  #allocation0 [shape = 'u32[]', space=smem, size = 0x4, offset = 0x4, fixed_abs, tag = 'smem constant byte address 0x4 - core index']
  #allocation1 [shape = 'u32[144,128]{1,0:T(1,128)}', space=vmem, size = 0x12000, scoped, tag = 'internal scratch']
  %s0 = inlined_call_operand.hbm [shape: f32[16,128], index: 0, kind: input, shape index: {}]
  %s1 = inlined_call_operand.vmem [shape: f32[1,128], index: 1, kind: input, shape index: {}]
  %s2 = inlined_call_operand.hbm [shape: f32[16,128], index: 2, kind: output, shape index: {}]
  %s3 = sld [smem:[#allocation0]]
  $region22: #{tpu_custom_call.1} parent=0
    _
  %s5 = ssub.s32 1, %s3
  %s6 = scalar_select 0, %s5, %s3
  $region1: #{tpu_custom_call.1} parent=0
    #allocation2 [shape = 'u8[8192]{0}', space=vmem, size = 0x2000, scoped, tag = 'input window, operand 0, single buffered']
    #allocation3 [shape = 's32[1]{0}', space=sflag, size = 0x4, scoped, tag = 'scoped memory for tpu_custom_call.1']
    #allocation4 [shape = 's32[1]{0}', space=sflag, size = 0x4, scoped, tag = 'scoped memory for tpu_custom_call.1']
    #allocation5 [shape = 'u8[8192]{0}', space=vmem, size = 0x2000, scoped, tag = 'output window, operand 0, single buffered']
    %7 = vsyncpa [#allocation3], 0
    %8 = vsyncpa [#allocation4], 0
    // Predicated region
    $region2: #{tpu_custom_call.1} parent=1 // pred_check
      _
    $region3: #{tpu_custom_call.1} parent=1 // pred_check_branch
      %10 = sbr.rel (0) target = $region5
    $region4: #{tpu_custom_call.1} parent=1 // pred_region
      %s12 = ssub.s32 256, 256
      %13 = vsyncadd [#allocation3], %s12
      %s14 = sshll.u32 [#allocation2], 4
      %s15 = int_to_ptr.vmem [resolvable:$true] %s14
      %20 = dma.hbm_to_vmem [thread:$0]  %s0, 256, %s15, [#allocation3], 128, 128, 8
    $region5: #{tpu_custom_call.1} parent=1 // pred_fallthru
      _
    // Predicated region
    $region6: #{tpu_custom_call.1} parent=1 // pred_check
      _
    $region7: #{tpu_custom_call.1} parent=1 // pred_check_branch
      %22 = sbr.rel (0) target = $region9
    $region8: #{tpu_custom_call.1} parent=1 // pred_region
      _
    $region9: #{tpu_custom_call.1} parent=1 // pred_fallthru
      _
    // Predicated region
    $region10: #{tpu_custom_call.1} parent=1 // pred_check
      _
    $region11: #{tpu_custom_call.1} parent=1 // pred_check_branch
      %24 = sbr.rel (0) target = $region13
    $region12: #{tpu_custom_call.1} parent=1 // pred_region
      %25 = dma.done [#allocation3], 256
    $region13: #{tpu_custom_call.1} parent=1 // pred_fallthru
      _
    %v26 = vld [vmem:[#allocation2] sm:$0xff]
    %v27 = vld [vmem:[#allocation2 + $0x8] sm:$0xff]
    %v28 = vmul.f32 %v26, %v26
    %v29 = vmul.f32 %v27, %v27
    %30 = vadd.xlane.f32.xlu0 %v28
    %v31 = vpop.xlane.xlu0 %30
    %32 = vadd.xlane.f32.xlu0 %v29
    %v33 = vpop.xlane.xlu0 %32
    %v34 = vmul.f32 %v31, 0.03125
    %v35 = vmul.f32 %v33, 0.03125
    %v36 = vadd.f32 %v34, 1e-05
    %v37 = vadd.f32 %v35, 1e-05
    %v38 = vrsqrt.pop %v36
    %v39 = vrsqrt.pop %v37
    %v40 = vmul.f32 %v26, %v38
    %v41 = vmul.f32 %v27, %v39
    %v42 = vld [vmem:[%s1] sm:$0x1]
    %v44 = vlaneseq
    %v45 = vshrl.u32 %v44, 7
    %v46 = vsub.s32 0, %v45
    %v47 = vrot.slane %v42, %v46
    %v49 = vmul.f32 %v40, %v47
    %v50 = vmul.f32 %v41, %v47
    %51 = vst [vmem:[#allocation5] sm:$0xff] %v49
    %52 = vst [vmem:[#allocation5 + $0x8] sm:$0xff] %v50
    // Predicated region
    $region14: #{tpu_custom_call.1} parent=1 // pred_check
      _
    $region15: #{tpu_custom_call.1} parent=1 // pred_check_branch
      %54 = sbr.rel (0) target = $region17
    $region16: #{tpu_custom_call.1} parent=1 // pred_region
      %s56 = ssub.s32 256, 256
      %57 = vsyncadd [#allocation4], %s56
      %s58 = sshll.u32 [#allocation5], 4
      %s59 = int_to_ptr.vmem [resolvable:$true] %s58
      %64 = dma.vmem_to_hbm [thread:$0]  %s59, 256, %s2, [#allocation4], 128, 128, 8
    $region17: #{tpu_custom_call.1} parent=1 // pred_fallthru
      _
    // Predicated region
    $region18: #{tpu_custom_call.1} parent=1 // pred_check
      _
    $region19: #{tpu_custom_call.1} parent=1 // pred_check_branch
      %66 = sbr.rel (0) target = $region21
    $region20: #{tpu_custom_call.1} parent=1 // pred_region
      %67 = dma.done [#allocation4], 256
    $region21: #{tpu_custom_call.1} parent=1 // pred_fallthru
      _
    %68 = vsyncpa [#allocation3], 1
    %69 = vsyncpa [#allocation4], 1

</llo_original>
